<compile_context>
chip_gen: v6e
topology: v6e:2x2x1
jax: 0.10.0
libtpu: 0.0.40
codegen_flags: <defaults>
</compile_context>

<pallas_src>
import jax
import jax.numpy as jnp
from jax import lax
from jax.experimental import pallas as pl
from jax.experimental.pallas import tpu as pltpu


def _round_up(x: int, m: int) -> int:
    return (x + m - 1) // m * m


def _linear_kernel(x_ref, w_ref, o_ref, acc_ref):
    # x_ref:   (tm, tk) original hidden-state dtype
    # w_ref:   (tn, tk) weight (compute) dtype, native (out, in) layout
    # o_ref:   (tm, tn) original hidden-state dtype
    # acc_ref: (tm, tn) f32 accumulator, resident across the K grid axis
    k = pl.program_id(2)

    @pl.when(k == 0)
    def _():
        acc_ref[...] = jnp.zeros_like(acc_ref)

    x = x_ref[...].astype(w_ref.dtype)              # hidden_states.to(weight.dtype)
    acc_ref[...] += lax.dot_general(                # x @ W^T on the MXU
        x, w_ref[...],
        dimension_numbers=(((1,), (1,)), ((), ())),
        preferred_element_type=jnp.float32)

    @pl.when(k == pl.num_programs(2) - 1)
    def _():
        o_ref[...] = acc_ref[...].astype(o_ref.dtype)   # .to(orig_dtype)


def plora_linear_inference(hidden_states: jax.Array, weight: jax.Array,
                           *, tm: int | None = None, tk: int | None = None,
                           tn: int | None = None) -> jax.Array:
    """Pallas equivalent of PLoRALinearLayerInference.forward.

    hidden_states: (..., in_features), any float dtype
    weight:        (out_features, in_features), compute dtype
    returns:       (..., out_features), same dtype as hidden_states
    """
    orig_dtype = hidden_states.dtype
    out_features, in_features = weight.shape
    assert hidden_states.shape[-1] == in_features

    lead_shape = hidden_states.shape[:-1]
    M = 1
    for d in lead_shape:
        M *= d
    x2d = hidden_states.reshape(M, in_features)

    # ---- tile selection: biggest MXU-friendly tiles, clamped to the problem ----
    sublane = 16 if jnp.dtype(orig_dtype).itemsize < 4 else 8
    if tm is None:
        tm = min(256, _round_up(M, sublane))
    if tk is None:
        tk = min(512, _round_up(in_features, 128))
    if tn is None:
        tn = min(256, _round_up(out_features, 128))

    Mp = _round_up(M, tm)
    Kp = _round_up(in_features, tk)
    Np = _round_up(out_features, tn)

    # Zero-pad (no-op when already aligned). Zero K-padding contributes nothing
    # to the contraction; padded M rows / N columns are sliced off afterwards.
    x_p = jnp.pad(x2d, ((0, Mp - M), (0, Kp - in_features)))
    w_p = jnp.pad(weight, ((0, Np - out_features), (0, Kp - in_features)))

    grid = (Mp // tm, Np // tn, Kp // tk)

    x_bytes = Mp * Kp * jnp.dtype(x_p.dtype).itemsize
    w_bytes = Np * Kp * jnp.dtype(w_p.dtype).itemsize
    o_bytes = Mp * Np * jnp.dtype(orig_dtype).itemsize
    cost = pl.CostEstimate(
        flops=2 * Mp * Kp * Np,
        transcendentals=0,
        bytes_accessed=x_bytes + w_bytes + o_bytes)

    out = pl.pallas_call(
        _linear_kernel,
        out_shape=jax.ShapeDtypeStruct((Mp, Np), orig_dtype),
        grid_spec=pltpu.PrefetchScalarGridSpec(
            num_scalar_prefetch=0,
            grid=grid,
            in_specs=[
                pl.BlockSpec((tm, tk), lambda i, j, k: (i, k)),   # activations
                pl.BlockSpec((tn, tk), lambda i, j, k: (j, k)),   # weight (out, in)
            ],
            out_specs=pl.BlockSpec((tm, tn), lambda i, j, k: (i, j)),
            scratch_shapes=[pltpu.VMEM((tm, tn), jnp.float32)],
        ),
        compiler_params=pltpu.CompilerParams(
            dimension_semantics=("parallel", "parallel", "arbitrary"),
            vmem_limit_bytes=48 * 1024 * 1024),
        cost_estimate=cost,
    )(x_p, w_p)

    out = out[:M, :out_features]
    return out.reshape(*lead_shape, out_features)


if __name__ == "__main__":
    key = jax.random.PRNGKey(0)
    kx, kw, kx2, kw2 = jax.random.split(key, 4)

    # Small shapes consistent with the module: batch=2, seq=8, hidden 32 -> 64.
    # hidden_states in float32 (orig dtype), weight in bfloat16 (module dtype)
    # to exercise the dtype round-trip in forward().
    batch, seq, in_features, out_features = 2, 8, 32, 64
    hidden_states = jax.random.normal(kx, (batch, seq, in_features), dtype=jnp.float32)
    weight = jax.random.normal(kw, (out_features, in_features),
                               dtype=jnp.float32).astype(jnp.bfloat16)

    y = jax.block_until_ready(plora_linear_inference(hidden_states, weight))
    ref = jnp.einsum("bsk,nk->bsn", hidden_states.astype(jnp.bfloat16), weight,
                     preferred_element_type=jnp.float32).astype(hidden_states.dtype)
    assert y.shape == (batch, seq, out_features)
    assert y.dtype == hidden_states.dtype
    assert jnp.allclose(y, ref, atol=2e-2, rtol=2e-2), "mismatch vs reference (small)"

    # Second check: unaligned M/N and K > tk exercises padding + K accumulation.
    b2, s2, k2, n2 = 2, 3, 640, 192
    hs2 = jax.random.normal(kx2, (b2, s2, k2), dtype=jnp.float32)
    w2 = jax.random.normal(kw2, (n2, k2), dtype=jnp.float32).astype(jnp.bfloat16)
    y2 = jax.block_until_ready(plora_linear_inference(hs2, w2))
    ref2 = jnp.einsum("bsk,nk->bsn", hs2.astype(jnp.bfloat16), w2,
                      preferred_element_type=jnp.float32).astype(hs2.dtype)
    assert y2.shape == (b2, s2, n2)
    assert y2.dtype == hs2.dtype
    assert jnp.allclose(y2, ref2, atol=5e-2, rtol=5e-2), "mismatch vs reference (tiled)"

    print("KERNEL_OK")
</pallas_src>

<mosaic_0001>
module attributes {stable_mosaic.version = 11 : i64} {
  func.func @_linear_kernel(%arg0: i32, %arg1: i32, %arg2: i32, %arg3: memref<16x128xf32, #tpu.memory_space<vmem>>, %arg4: memref<128x128xbf16, #tpu.memory_space<vmem>>, %arg5: memref<16x128xf32, #tpu.memory_space<vmem>>, %arg6: memref<16x128xf32, #tpu.memory_space<vmem>>) attributes {dimension_semantics = [#tpu.dimension_semantics<parallel>, #tpu.dimension_semantics<parallel>, #tpu.dimension_semantics<arbitrary>], iteration_bounds = array<i64: 1, 1, 1>, scalar_prefetch = 0 : i64, scratch_operands = 1 : i64, tpu.core_type = #tpu.core_type<tc>, window_params = [{transform_indices = @transform_0, window_bounds = array<i64: 16, 128>}, {transform_indices = @transform_1, window_bounds = array<i64: 128, 128>}, {transform_indices = @transform_2, window_bounds = array<i64: 16, 128>}]} {
    %c0_i32 = arith.constant 0 : i32
    %0 = arith.cmpi eq, %arg2, %c0_i32 : i32
    %1 = arith.extui %0 : i1 to i32
    %c0_i32_0 = arith.constant 0 : i32
    %2 = arith.cmpi ne, %1, %c0_i32_0 : i32
    scf.if %2 {
      %cst_10 = arith.constant 0.000000e+00 : f32
      %13 = vector.broadcast %cst_10 : f32 to vector<16x128xf32>
      %c0_11 = arith.constant 0 : index
      %c0_12 = arith.constant 0 : index
      %14 = vector.load %arg6[%c0_11, %c0_12] : memref<16x128xf32, #tpu.memory_space<vmem>>, vector<16x128xf32>
      tpu.vector_store %arg6[%c0_11, %c0_12], %13 {strides = array<i32>} : memref<16x128xf32, #tpu.memory_space<vmem>>, vector<16x128xf32>,
    } else {
    }
    %c0 = arith.constant 0 : index
    %c0_1 = arith.constant 0 : index
    %3 = vector.load %arg3[%c0, %c0_1] : memref<16x128xf32, #tpu.memory_space<vmem>>, vector<16x128xf32>
    %4 = arith.truncf %3 : vector<16x128xf32> to vector<16x128xbf16>
    %c0_2 = arith.constant 0 : index
    %c0_3 = arith.constant 0 : index
    %5 = vector.load %arg6[%c0_2, %c0_3] : memref<16x128xf32, #tpu.memory_space<vmem>>, vector<16x128xf32>
    %c0_4 = arith.constant 0 : index
    %c0_5 = arith.constant 0 : index
    %6 = vector.load %arg4[%c0_4, %c0_5] : memref<128x128xbf16, #tpu.memory_space<vmem>>, vector<128x128xbf16>
    %cst = arith.constant dense<0.000000e+00> : vector<16x128xf32>
    %7 = tpu.matmul %4, %6, %cst {dimension_numbers = #tpu.dot_dimension_numbers<[1], [1], [0], [0], [0, 0, 1, 0], [], []>} : vector<16x128xbf16>, vector<128x128xbf16>, vector<16x128xf32> -> vector<16x128xf32>
    %8 = arith.addf %5, %7 : vector<16x128xf32>
    %c0_6 = arith.constant 0 : index
    %c0_7 = arith.constant 0 : index
    %9 = vector.load %arg6[%c0_6, %c0_7] : memref<16x128xf32, #tpu.memory_space<vmem>>, vector<16x128xf32>
    tpu.vector_store %arg6[%c0_6, %c0_7], %8 {strides = array<i32>} : memref<16x128xf32, #tpu.memory_space<vmem>>, vector<16x128xf32>,
    %c0_i32_8 = arith.constant 0 : i32
    %10 = arith.cmpi eq, %arg2, %c0_i32_8 : i32
    %11 = arith.extui %10 : i1 to i32
    %c0_i32_9 = arith.constant 0 : i32
    %12 = arith.cmpi ne, %11, %c0_i32_9 : i32
    scf.if %12 {
      %c0_10 = arith.constant 0 : index
      %c0_11 = arith.constant 0 : index
      %13 = vector.load %arg6[%c0_10, %c0_11] : memref<16x128xf32, #tpu.memory_space<vmem>>, vector<16x128xf32>
      %c0_12 = arith.constant 0 : index
      %c0_13 = arith.constant 0 : index
      %14 = vector.load %arg5[%c0_12, %c0_13] : memref<16x128xf32, #tpu.memory_space<vmem>>, vector<16x128xf32>
      tpu.vector_store %arg5[%c0_12, %c0_13], %13 {strides = array<i32>} : memref<16x128xf32, #tpu.memory_space<vmem>>, vector<16x128xf32>,
    } else {
    }
    return
  }
  func.func @transform_0(%arg0: i32, %arg1: i32, %arg2: i32) -> (i32, i32) {
    %c0_i32 = arith.constant 0 : i32
    return %arg0, %arg2 : i32, i32
  }
  func.func @transform_1(%arg0: i32, %arg1: i32, %arg2: i32) -> (i32, i32) {
    %c0_i32 = arith.constant 0 : i32
    return %arg1, %arg2 : i32, i32
  }
  func.func @transform_2(%arg0: i32, %arg1: i32, %arg2: i32) -> (i32, i32) {
    %c0_i32 = arith.constant 0 : i32
    return %arg0, %arg1 : i32, i32
  }
}

</mosaic_0001>

<llo_original>
// kernel: tpu_custom_call.1
$region0: #{tpu_custom_call.1}
  #allocation0 [shape = 'u32[]', space=smem, size = 0x4, offset = 0x4, fixed_abs, tag = 'smem constant byte address 0x4 - core index']
  #allocation1 [shape = 'u32[144,128]{1,0:T(1,128)}', space=vmem, size = 0x12000, scoped, tag = 'internal scratch']
  #allocation2 [shape = 'f32[16,128]{1,0:T(8,128)}', space=vmem, size = 0x2000, scoped, tag = 'scratch operand']
  %s0 = inlined_call_operand.hbm [shape: f32[16,128], index: 0, kind: input, shape index: {}]
  %s1 = inlined_call_operand.hbm [shape: bf16[128,128], index: 1, kind: input, shape index: {}]
  %s2 = inlined_call_operand.hbm [shape: f32[16,128], index: 2, kind: output, shape index: {}]
  %s3 = sld [smem:[#allocation0]]
  $region34: #{tpu_custom_call.1} parent=0
    _
  %s5 = ssub.s32 1, %s3
  %s6 = scalar_select 0, %s5, %s3
  $region1: #{tpu_custom_call.1} parent=0
    #allocation3 [shape = 'u8[8192]{0}', space=vmem, size = 0x2000, scoped, tag = 'input window, operand 0, single buffered']
    #allocation4 [shape = 's32[1]{0}', space=sflag, size = 0x4, scoped, tag = 'scoped memory for tpu_custom_call.1']
    #allocation5 [shape = 's32[1]{0}', space=sflag, size = 0x4, scoped, tag = 'scoped memory for tpu_custom_call.1']
    #allocation6 [shape = 'u8[32768]{0}', space=vmem, size = 0x8000, scoped, tag = 'input window, operand 1, single buffered']
    #allocation7 [shape = 's32[1]{0}', space=sflag, size = 0x4, scoped, tag = 'scoped memory for tpu_custom_call.1']
    #allocation8 [shape = 'u8[8192]{0}', space=vmem, size = 0x2000, scoped, tag = 'output window, operand 0, single buffered']
    %7 = vsyncpa [#allocation4], 0
    %8 = vsyncpa [#allocation7], 0
    %9 = vsyncpa [#allocation5], 0
    // Predicated region
    $region2: #{tpu_custom_call.1} parent=1 // pred_check
      _
    $region3: #{tpu_custom_call.1} parent=1 // pred_check_branch
      %11 = sbr.rel (0) target = $region5
    $region4: #{tpu_custom_call.1} parent=1 // pred_region
      %s13 = ssub.s32 256, 256
      %14 = vsyncadd [#allocation4], %s13
      %s15 = sshll.u32 [#allocation3], 4
      %s16 = int_to_ptr.vmem [resolvable:$true] %s15
      %21 = dma.hbm_to_vmem [thread:$0]  %s0, 256, %s16, [#allocation4], 128, 128, 8
    $region5: #{tpu_custom_call.1} parent=1 // pred_fallthru
      _
    // Predicated region
    $region6: #{tpu_custom_call.1} parent=1 // pred_check
      _
    $region7: #{tpu_custom_call.1} parent=1 // pred_check_branch
      %23 = sbr.rel (0) target = $region9
    $region8: #{tpu_custom_call.1} parent=1 // pred_region
      %s25 = ssub.s32 1024, 1024
      %26 = vsyncadd [#allocation7], %s25
      %s27 = sshll.u32 [#allocation6], 4
      %s28 = int_to_ptr.vmem [resolvable:$true] %s27
      %33 = dma.hbm_to_vmem [thread:$0]  %s1, 1024, %s28, [#allocation7], 64, 64, 4
    $region9: #{tpu_custom_call.1} parent=1 // pred_fallthru
      _
    // Predicated region
    $region10: #{tpu_custom_call.1} parent=1 // pred_check
      _
    $region11: #{tpu_custom_call.1} parent=1 // pred_check_branch
      %35 = sbr.rel (0) target = $region13
    $region12: #{tpu_custom_call.1} parent=1 // pred_region
      %36 = dma.done [#allocation4], 256
    $region13: #{tpu_custom_call.1} parent=1 // pred_fallthru
      _
    // Predicated region
    $region14: #{tpu_custom_call.1} parent=1 // pred_check
      _
    $region15: #{tpu_custom_call.1} parent=1 // pred_check_branch
      %38 = sbr.rel (0) target = $region17
    $region16: #{tpu_custom_call.1} parent=1 // pred_region
      %39 = dma.done [#allocation7], 1024
    $region17: #{tpu_custom_call.1} parent=1 // pred_fallthru
      _
    %p41 = scmp.eq.s32.totalorder 0, 0
    // Predicated region
    $region18: #{tpu_custom_call.1} parent=1 // pred_check
      %p42 = pneg %p41
    $region19: #{tpu_custom_call.1} parent=1 // pred_check_branch
      %44 = sbr.rel (%p42) target = $region21
    $region20: #{tpu_custom_call.1} parent=1 // pred_region
      %45 = vst [vmem:[#allocation2] sm:$0xff] 0.0
      %46 = vst [vmem:[#allocation2 + $0x8] sm:$0xff] 0.0
    $region21: #{tpu_custom_call.1} parent=1 // pred_fallthru
      _
    %v47 = vld [vmem:[#allocation3] sm:$0xff]
    %v48 = vld [vmem:[#allocation3 + $0x8] sm:$0xff]
    %v49 = vpack.c.bf16 %v48, %v47
    %v50 = vld [vmem:[#allocation2] sm:$0xff]
    %v51 = vld [vmem:[#allocation2 + $0x8] sm:$0xff]
    %v52 = vld [vmem:[#allocation6] sm:$0xf]
    %v53 = vld [vmem:[#allocation6 + $0x4] sm:$0xf]
    %v54 = vld [vmem:[#allocation6 + $0x8] sm:$0xf]
    %v55 = vld [vmem:[#allocation6 + $0xc] sm:$0xf]
    %v56 = vld [vmem:[#allocation6 + $0x10] sm:$0xf]
    %v57 = vld [vmem:[#allocation6 + $0x14] sm:$0xf]
    %v58 = vld [vmem:[#allocation6 + $0x18] sm:$0xf]
    %v59 = vld [vmem:[#allocation6 + $0x1c] sm:$0xf]
    %v60 = vld [vmem:[#allocation6 + $0x20] sm:$0xf]
    %v61 = vld [vmem:[#allocation6 + $0x24] sm:$0xf]
    %v62 = vld [vmem:[#allocation6 + $0x28] sm:$0xf]
    %v63 = vld [vmem:[#allocation6 + $0x2c] sm:$0xf]
    %v64 = vld [vmem:[#allocation6 + $0x30] sm:$0xf]
    %v65 = vld [vmem:[#allocation6 + $0x34] sm:$0xf]
    %v66 = vld [vmem:[#allocation6 + $0x38] sm:$0xf]
    %v67 = vld [vmem:[#allocation6 + $0x3c] sm:$0xf]
    %v84 = vunpack.c.l.b16 %v52
    %v85 = vunpack.c.l.b16 %v53
    %v86 = vunpack.c.l.b16 %v54
    %v87 = vunpack.c.l.b16 %v55
    %v88 = vunpack.c.l.b16 %v56
    %v89 = vunpack.c.l.b16 %v57
    %v90 = vunpack.c.l.b16 %v58
    %v91 = vunpack.c.l.b16 %v59
    %v92 = vunpack.c.l.b16 %v60
    %v93 = vunpack.c.l.b16 %v61
    %v94 = vunpack.c.l.b16 %v62
    %v95 = vunpack.c.l.b16 %v63
    %v96 = vunpack.c.l.b16 %v64
    %v97 = vunpack.c.l.b16 %v65
    %v98 = vunpack.c.l.b16 %v66
    %v99 = vunpack.c.l.b16 %v67
    %v100 = vpack.c.b16 %v85, %v84
    %v101 = vpack.c.b16 %v87, %v86
    %v102 = vpack.c.b16 %v89, %v88
    %v103 = vpack.c.b16 %v91, %v90
    %v104 = vpack.c.b16 %v93, %v92
    %v105 = vpack.c.b16 %v95, %v94
    %v106 = vpack.c.b16 %v97, %v96
    %v107 = vpack.c.b16 %v99, %v98
    %116 = vmatprep.subr.bf16.mxu0 0
    %117 = vmatpush1.bf16.xpose.msra.mxu0 %v107
    %118 = vmatprep.subr.bf16.mxu0 0
    %119 = vmatpush1.bf16.xpose.msra.mxu0 %v106
    %120 = vmatprep.subr.bf16.mxu0 0
    %121 = vmatpush1.bf16.xpose.msra.mxu0 %v105
    %122 = vmatprep.subr.bf16.mxu0 0
    %123 = vmatpush1.bf16.xpose.msra.mxu0 %v104
    %124 = vmatprep.subr.bf16.mxu0 0
    %125 = vmatpush1.bf16.xpose.msra.mxu0 %v103
    %126 = vmatprep.subr.bf16.mxu0 0
    %127 = vmatpush1.bf16.xpose.msra.mxu0 %v102
    %128 = vmatprep.subr.bf16.mxu0 0
    %129 = vmatpush1.bf16.xpose.msra.mxu0 %v101
    %130 = vmatprep.subr.bf16.mxu0 0
    %131 = vmatpush1.bf16.xpose.msra.mxu0 %v100
    %132 = vmatprep.subr.bf16.mxu0 0
    %133 = vmatpush2.bf16.xpose.msra.mxu0 0
    %134 = vmatprep.subr.bf16.mxu0 0
    %135 = vmatpush2.bf16.xpose.msra.mxu0 0
    %136 = vmatprep.subr.bf16.mxu0 0
    %137 = vmatpush2.bf16.xpose.msra.mxu0 0
    %138 = vmatprep.subr.bf16.mxu0 0
    %139 = vmatpush2.bf16.xpose.msra.mxu0 0
    %140 = vmatprep.subr.bf16.mxu0 0
    %141 = vmatpush2.bf16.xpose.msra.mxu0 0
    %142 = vmatprep.subr.bf16.mxu0 0
    %143 = vmatpush2.bf16.xpose.msra.mxu0 0
    %144 = vmatprep.subr.bf16.mxu0 0
    %145 = vmatpush2.bf16.xpose.msra.mxu0 0
    %146 = vmatprep.subr.bf16.mxu0 0
    %147 = vmatpush2.bf16.xpose.msra.mxu0 0
    %148 = vmatprep.mubr.bf16.mxu0 0
    %149 = vmatmul.mubr.bf16.gmra.mxu0 %v49
    %v150 = vpop.f32.mrf.mxu0
    %v151 = vadd.f32 0.0, %v150
    %v152 = vpop.f32.mrf.mxu0
    %v153 = vpop.f32.mrf.mxu0
    %v154 = vadd.f32 0.0, %v153
    %v155 = vpop.f32.mrf.mxu0
    %156 = vdwg.mxu0
    %v157 = vadd.f32 %v50, %v151
    %v158 = vadd.f32 %v51, %v154
    %159 = vst [vmem:[#allocation2] sm:$0xff] %v157
    %160 = vst [vmem:[#allocation2 + $0x8] sm:$0xff] %v158
    // Predicated region
    $region22: #{tpu_custom_call.1} parent=1 // pred_check
      %p161 = pneg %p41
    $region23: #{tpu_custom_call.1} parent=1 // pred_check_branch
      %163 = sbr.rel (%p161) target = $region25
    $region24: #{tpu_custom_call.1} parent=1 // pred_region
      %v164 = vld [vmem:[#allocation2] sm:$0xff]
      %v165 = vld [vmem:[#allocation2 + $0x8] sm:$0xff]
      %166 = vst [vmem:[#allocation8] sm:$0xff] %v164
      %167 = vst [vmem:[#allocation8 + $0x8] sm:$0xff] %v165
    $region25: #{tpu_custom_call.1} parent=1 // pred_fallthru
      _
    // Predicated region
    $region26: #{tpu_custom_call.1} parent=1 // pred_check
      _
    $region27: #{tpu_custom_call.1} parent=1 // pred_check_branch
      %169 = sbr.rel (0) target = $region29
    $region28: #{tpu_custom_call.1} parent=1 // pred_region
      %s171 = ssub.s32 256, 256
      %172 = vsyncadd [#allocation5], %s171
      %s173 = sshll.u32 [#allocation8], 4
      %s174 = int_to_ptr.vmem [resolvable:$true] %s173
      %179 = dma.vmem_to_hbm [thread:$0]  %s174, 256, %s2, [#allocation5], 128, 128, 8
    $region29: #{tpu_custom_call.1} parent=1 // pred_fallthru
      _
    // Predicated region
    $region30: #{tpu_custom_call.1} parent=1 // pred_check
      _
    $region31: #{tpu_custom_call.1} parent=1 // pred_check_branch
      %181 = sbr.rel (0) target = $region33
    $region32: #{tpu_custom_call.1} parent=1 // pred_region
      %182 = dma.done [#allocation5], 256
    $region33: #{tpu_custom_call.1} parent=1 // pred_fallthru
      _
    %183 = vsyncpa [#allocation4], 1
    %184 = vsyncpa [#allocation7], 1
    %185 = vsyncpa [#allocation5], 1

</llo_original>
